<compile_context>
chip_gen: v6e
topology: v6e:2x2x1
jax: 0.10.0
libtpu: 0.0.40
codegen_flags: <defaults>
</compile_context>

<pallas_src>
import math

import jax
import jax.numpy as jnp
from jax.experimental import pallas as pl
from jax.experimental.pallas import tpu as pltpu


def _point_embed_kernel(x_ref, basis_ref, w_ref, gamma_ref, beta_ref, o_ref):
    # x_ref:   (1, TN, 3)   f32   current (batch, N-tile) slice
    # basis:   (3, H/2)     f32
    # w:       (H+4, D)     bf16  stacked [W_sin; W_cos; W_x; b]
    # gamma, beta: (1, D)   f32
    # o_ref:   (1, TN, D)   bf16 (or f32 if requested)
    x = x_ref[0]                                   # (TN, 3) f32
    tn = x.shape[0]
    x0 = x[:, 0:1]
    x1 = x[:, 1:2]
    x2 = x[:, 2:3]

    # Fourier projection as 3 broadcast FMAs on the VPU (avoids a K=3 MXU pass).
    basis = basis_ref[...]                         # (3, H/2)
    proj = (x0 * basis[0:1, :]
            + x1 * basis[1:2, :]
            + x2 * basis[2:3, :])                  # (TN, H/2) f32

    # Build the fused MXU operand: [sin, cos, x, 1] -> (TN, H+4) bf16.
    # x and bias ride the (nearly idle) MXU instead of 4 full-width VPU FMAs.
    feat = jnp.concatenate(
        [jnp.sin(proj), jnp.cos(proj), x,
         jnp.ones((tn, 1), jnp.float32)],
        axis=-1).astype(jnp.bfloat16)              # (TN, H+4)

    # Single bf16 MXU matmul with f32 accumulation.
    y = jnp.dot(feat, w_ref[...],
                preferred_element_type=jnp.float32)            # (TN, D) f32

    # LayerNorm over the last dim, single reduction pass (eps=1e-5, biased var).
    d_inv = 1.0 / y.shape[-1]
    s1 = jnp.sum(y, axis=-1, keepdims=True)
    s2 = jnp.sum(y * y, axis=-1, keepdims=True)
    mean = s1 * d_inv
    var = s2 * d_inv - mean * mean
    inv = jax.lax.rsqrt(var + 1e-5)
    out = (y - mean) * (inv * gamma_ref[...]) + beta_ref[...]
    o_ref[0] = out.astype(o_ref.dtype)


def point_embed(x, basis, w, b, gamma, beta, hidden_dim, dim, *,
                tile_n=8192, out_dtype=jnp.bfloat16,
                vmem_limit_bytes=48 * 1024 * 1024):
    """x: (B, N, 3) f32.  w: (dim, hidden_dim+3), b/gamma/beta: (dim,)."""
    B, N, _ = x.shape
    H = hidden_dim

    # One fused MXU weight: rows = [W_sin^T; W_cos^T; W_x^T; b] -> (H+4, dim) bf16.
    w_full = jnp.concatenate(
        [jnp.transpose(w).astype(jnp.float32), b.reshape(1, dim)],
        axis=0).astype(jnp.bfloat16)                            # (H+4, dim)
    g2 = gamma.reshape(1, dim).astype(jnp.float32)
    be2 = beta.reshape(1, dim).astype(jnp.float32)
    basis = basis.astype(jnp.float32)                           # (3, H/2)

    # N-tiling: full extent if it fits, otherwise tile_n rows (multiple of 8).
    if N <= tile_n:
        tn = N
    else:
        tn = (tile_n // 8) * 8
        assert tn > 0
    n_tiles = pl.cdiv(N, tn)
    # NOTE: for N % tn != 0 the padded rows of the last tile compute on
    # whatever is resident in VMEM; rows are independent (per-row LayerNorm)
    # and the writeback is masked, so this is harmless by design.

    def rep(shape):
        return pl.BlockSpec(shape, lambda bi, ni: tuple(0 for _ in shape))

    return pl.pallas_call(
        _point_embed_kernel,
        out_shape=jax.ShapeDtypeStruct((B, N, dim), out_dtype),
        grid_spec=pltpu.PrefetchScalarGridSpec(
            num_scalar_prefetch=0,
            grid=(B, n_tiles),
            in_specs=[
                pl.BlockSpec((1, tn, 3), lambda bi, ni: (bi, ni, 0)),
                rep(basis.shape),       # (3, H/2)
                rep(w_full.shape),      # (H+4, dim)
                rep((1, dim)),          # gamma
                rep((1, dim)),          # beta
            ],
            out_specs=pl.BlockSpec((1, tn, dim), lambda bi, ni: (bi, ni, 0)),
        ),
        compiler_params=pltpu.CompilerParams(
            dimension_semantics=("parallel", "parallel"),
            vmem_limit_bytes=vmem_limit_bytes),
    )(x, basis, w_full, g2, be2)


def make_basis(hidden_dim):
    """Replicates the registered 'basis' buffer: shape (3, hidden_dim // 2)."""
    k = hidden_dim // 6
    e = (2.0 ** jnp.arange(k, dtype=jnp.float32)) * math.pi
    z = jnp.zeros((k,), jnp.float32)
    row0 = jnp.concatenate([e, z, z])
    row1 = jnp.concatenate([z, e, z])
    row2 = jnp.concatenate([z, z, e])
    return jnp.stack([row0, row1, row2], axis=0)                # (3, 3k)


def reference(x, basis, w, b, gamma, beta):
    """Plain-JAX f32 reference of the PyTorch forward."""
    proj = jnp.einsum('bnd,de->bne', x, basis)
    emb = jnp.concatenate([jnp.sin(proj), jnp.cos(proj)], axis=2)
    feat = jnp.concatenate([emb, x], axis=2)
    y = jnp.einsum('bnf,of->bno', feat, w) + b
    mean = jnp.mean(y, axis=-1, keepdims=True)
    var = jnp.mean((y - mean) ** 2, axis=-1, keepdims=True)
    return (y - mean) / jnp.sqrt(var + 1e-5) * gamma + beta


if __name__ == "__main__":
    hidden_dim = 48   # module default (must be divisible by 6)
    dim = 128         # module default output dim
    B, N = 2, 64      # small point cloud; tile_n=16 exercises the tiled path

    key = jax.random.PRNGKey(0)
    kx, kw, kb, kg, kbe = jax.random.split(key, 5)

    x = jax.random.normal(kx, (B, N, 3), dtype=jnp.float32)

    fan_in = hidden_dim + 3
    bound = 1.0 / math.sqrt(fan_in)
    w = jax.random.uniform(kw, (dim, fan_in), jnp.float32, -bound, bound)
    b = jax.random.uniform(kb, (dim,), jnp.float32, -bound, bound)
    gamma = jnp.ones((dim,), jnp.float32) + 0.01 * jax.random.normal(kg, (dim,))
    beta = 0.01 * jax.random.normal(kbe, (dim,))

    basis = make_basis(hidden_dim)

    out = point_embed(x, basis, w, b, gamma, beta, hidden_dim, dim, tile_n=16)
    out = jax.block_until_ready(out)

    ref = reference(x, basis, w, b, gamma, beta)
    assert out.shape == (B, N, dim)
    assert out.dtype == jnp.bfloat16
    # bf16 MXU operands + bf16 output writeback -> tolerance loosened vs f32 ref.
    err = jnp.max(jnp.abs(out.astype(jnp.float32) - ref))
    assert err < 8e-2, f"mismatch vs reference: {err}"

    print("KERNEL_OK")
</pallas_src>

<mosaic_0001>
module attributes {stable_mosaic.version = 11 : i64} {
  func.func @_point_embed_kernel(%arg0: i32, %arg1: i32, %arg2: memref<1x16x3xf32, #tpu.memory_space<vmem>>, %arg3: memref<3x24xf32, #tpu.memory_space<vmem>>, %arg4: memref<52x128xbf16, #tpu.memory_space<vmem>>, %arg5: memref<1x128xf32, #tpu.memory_space<vmem>>, %arg6: memref<1x128xf32, #tpu.memory_space<vmem>>, %arg7: memref<1x16x128xbf16, #tpu.memory_space<vmem>>) attributes {dimension_semantics = [#tpu.dimension_semantics<parallel>, #tpu.dimension_semantics<parallel>], iteration_bounds = array<i64: 2, 4>, scalar_prefetch = 0 : i64, scratch_operands = 0 : i64, tpu.core_type = #tpu.core_type<tc>, window_params = [{transform_indices = @transform_0, window_bounds = array<i64: 1, 16, 3>}, {pipeline_mode = #tpu.pipeline_mode<synchronous>, transform_indices = @transform_1, window_bounds = array<i64: 3, 24>}, {pipeline_mode = #tpu.pipeline_mode<synchronous>, transform_indices = @transform_2, window_bounds = array<i64: 52, 128>}, {pipeline_mode = #tpu.pipeline_mode<synchronous>, transform_indices = @transform_3, window_bounds = array<i64: 1, 128>}, {pipeline_mode = #tpu.pipeline_mode<synchronous>, transform_indices = @transform_4, window_bounds = array<i64: 1, 128>}, {transform_indices = @transform_5, window_bounds = array<i64: 1, 16, 128>}]} {
    %c0 = arith.constant 0 : index
    %c0_0 = arith.constant 0 : index
    %c0_1 = arith.constant 0 : index
    %0 = vector.load %arg2[%c0, %c0_0, %c0_1] : memref<1x16x3xf32, #tpu.memory_space<vmem>>, vector<1x16x3xf32>
    %1 = vector.shape_cast %0 : vector<1x16x3xf32> to vector<16x3xf32>
    %2 = vector.extract_strided_slice %1 {offsets = [0, 0], sizes = [16, 1], strides = [1, 1]} : vector<16x3xf32> to vector<16x1xf32>
    %3 = vector.extract_strided_slice %1 {offsets = [0, 1], sizes = [16, 1], strides = [1, 1]} : vector<16x3xf32> to vector<16x1xf32>
    %4 = vector.extract_strided_slice %1 {offsets = [0, 2], sizes = [16, 1], strides = [1, 1]} : vector<16x3xf32> to vector<16x1xf32>
    %c0_2 = arith.constant 0 : index
    %c0_3 = arith.constant 0 : index
    %5 = vector.load %arg3[%c0_2, %c0_3] : memref<3x24xf32, #tpu.memory_space<vmem>>, vector<3x24xf32>
    %6 = vector.extract_strided_slice %5 {offsets = [0, 0], sizes = [1, 24], strides = [1, 1]} : vector<3x24xf32> to vector<1x24xf32>
    %7 = vector.broadcast %2 : vector<16x1xf32> to vector<16x24xf32>
    %8 = vector.broadcast %6 : vector<1x24xf32> to vector<16x24xf32>
    %9 = arith.mulf %7, %8 : vector<16x24xf32>
    %10 = vector.extract_strided_slice %5 {offsets = [1, 0], sizes = [1, 24], strides = [1, 1]} : vector<3x24xf32> to vector<1x24xf32>
    %11 = vector.broadcast %3 : vector<16x1xf32> to vector<16x24xf32>
    %12 = vector.broadcast %10 : vector<1x24xf32> to vector<16x24xf32>
    %13 = arith.mulf %11, %12 : vector<16x24xf32>
    %14 = arith.addf %9, %13 : vector<16x24xf32>
    %15 = vector.extract_strided_slice %5 {offsets = [2, 0], sizes = [1, 24], strides = [1, 1]} : vector<3x24xf32> to vector<1x24xf32>
    %16 = vector.broadcast %4 : vector<16x1xf32> to vector<16x24xf32>
    %17 = vector.broadcast %15 : vector<1x24xf32> to vector<16x24xf32>
    %18 = arith.mulf %16, %17 : vector<16x24xf32>
    %19 = arith.addf %14, %18 : vector<16x24xf32>
    %20 = math.sin %19 : vector<16x24xf32>
    %21 = math.cos %19 : vector<16x24xf32>
    %cst = arith.constant 1.000000e+00 : f32
    %22 = vector.broadcast %cst : f32 to vector<16x1xf32>
    %23 = tpu.concatenate %20, %21, %1, %22 in 1 : vector<16x24xf32>, vector<16x24xf32>, vector<16x3xf32>, vector<16x1xf32> -> vector<16x52xf32>
    %24 = arith.truncf %23 : vector<16x52xf32> to vector<16x52xbf16>
    %c0_4 = arith.constant 0 : index
    %c0_5 = arith.constant 0 : index
    %25 = vector.load %arg4[%c0_4, %c0_5] : memref<52x128xbf16, #tpu.memory_space<vmem>>, vector<52x128xbf16>
    %cst_6 = arith.constant dense<0.000000e+00> : vector<16x128xf32>
    %26 = tpu.matmul %24, %25, %cst_6 {dimension_numbers = #tpu.dot_dimension_numbers<[1], [0], [0], [1], [0, 0, 1, 1], [], []>} : vector<16x52xbf16>, vector<52x128xbf16>, vector<16x128xf32> -> vector<16x128xf32>
    %cst_7 = arith.constant dense<0.000000e+00> : vector<16xf32>
    %27 = vector.multi_reduction <add>, %26, %cst_7 [1] : vector<16x128xf32> to vector<16xf32>
    %28 = vector.shape_cast %27 : vector<16xf32> to vector<16x1xf32>
    %29 = arith.mulf %26, %26 : vector<16x128xf32>
    %cst_8 = arith.constant dense<0.000000e+00> : vector<16xf32>
    %30 = vector.multi_reduction <add>, %29, %cst_8 [1] : vector<16x128xf32> to vector<16xf32>
    %31 = vector.shape_cast %30 : vector<16xf32> to vector<16x1xf32>
    %cst_9 = arith.constant 7.812500e-03 : f32
    %32 = vector.broadcast %cst_9 : f32 to vector<16x1xf32>
    %33 = arith.mulf %28, %32 : vector<16x1xf32>
    %cst_10 = arith.constant 7.812500e-03 : f32
    %34 = vector.broadcast %cst_10 : f32 to vector<16x1xf32>
    %35 = arith.mulf %31, %34 : vector<16x1xf32>
    %36 = arith.mulf %33, %33 : vector<16x1xf32>
    %37 = arith.subf %35, %36 : vector<16x1xf32>
    %cst_11 = arith.constant 9.99999974E-6 : f32
    %38 = vector.broadcast %cst_11 : f32 to vector<16x1xf32>
    %39 = arith.addf %37, %38 : vector<16x1xf32>
    %40 = math.rsqrt %39 : vector<16x1xf32>
    %41 = vector.broadcast %33 : vector<16x1xf32> to vector<16x128xf32>
    %42 = arith.subf %26, %41 : vector<16x128xf32>
    %c0_12 = arith.constant 0 : index
    %c0_13 = arith.constant 0 : index
    %43 = vector.load %arg5[%c0_12, %c0_13] : memref<1x128xf32, #tpu.memory_space<vmem>>, vector<1x128xf32>
    %44 = vector.broadcast %40 : vector<16x1xf32> to vector<16x128xf32>
    %45 = vector.broadcast %43 : vector<1x128xf32> to vector<16x128xf32>
    %46 = arith.mulf %44, %45 : vector<16x128xf32>
    %47 = arith.mulf %42, %46 : vector<16x128xf32>
    %c0_14 = arith.constant 0 : index
    %c0_15 = arith.constant 0 : index
    %48 = vector.load %arg6[%c0_14, %c0_15] : memref<1x128xf32, #tpu.memory_space<vmem>>, vector<1x128xf32>
    %49 = vector.broadcast %48 : vector<1x128xf32> to vector<16x128xf32>
    %50 = arith.addf %47, %49 : vector<16x128xf32>
    %51 = arith.truncf %50 : vector<16x128xf32> to vector<16x128xbf16>
    %c0_16 = arith.constant 0 : index
    %c0_17 = arith.constant 0 : index
    %c0_18 = arith.constant 0 : index
    %52 = vector.load %arg7[%c0_16, %c0_17, %c0_18] : memref<1x16x128xbf16, #tpu.memory_space<vmem>>, vector<1x16x128xbf16>
    %53 = vector.shape_cast %52 : vector<1x16x128xbf16> to vector<16x128xbf16>
    %54 = vector.shape_cast %51 : vector<16x128xbf16> to vector<1x16x128xbf16>
    tpu.vector_store %arg7[%c0_16, %c0_17, %c0_18], %54 {strides = array<i32>} : memref<1x16x128xbf16, #tpu.memory_space<vmem>>, vector<1x16x128xbf16>,
    return
  }
  func.func @transform_0(%arg0: i32, %arg1: i32) -> (i32, i32, i32) {
    %c0_i32 = arith.constant 0 : i32
    %c0_i32_0 = arith.constant 0 : i32
    return %arg0, %arg1, %c0_i32 : i32, i32, i32
  }
  func.func @transform_1(%arg0: i32, %arg1: i32) -> (i32, i32) {
    %c0_i32 = arith.constant 0 : i32
    %c0_i32_0 = arith.constant 0 : i32
    %c0_i32_1 = arith.constant 0 : i32
    return %c0_i32, %c0_i32_0 : i32, i32
  }
  func.func @transform_2(%arg0: i32, %arg1: i32) -> (i32, i32) {
    %c0_i32 = arith.constant 0 : i32
    %c0_i32_0 = arith.constant 0 : i32
    %c0_i32_1 = arith.constant 0 : i32
    return %c0_i32, %c0_i32_0 : i32, i32
  }
  func.func @transform_3(%arg0: i32, %arg1: i32) -> (i32, i32) {
    %c0_i32 = arith.constant 0 : i32
    %c0_i32_0 = arith.constant 0 : i32
    %c0_i32_1 = arith.constant 0 : i32
    return %c0_i32, %c0_i32_0 : i32, i32
  }
  func.func @transform_4(%arg0: i32, %arg1: i32) -> (i32, i32) {
    %c0_i32 = arith.constant 0 : i32
    %c0_i32_0 = arith.constant 0 : i32
    %c0_i32_1 = arith.constant 0 : i32
    return %c0_i32, %c0_i32_0 : i32, i32
  }
  func.func @transform_5(%arg0: i32, %arg1: i32) -> (i32, i32, i32) {
    %c0_i32 = arith.constant 0 : i32
    %c0_i32_0 = arith.constant 0 : i32
    return %arg0, %arg1, %c0_i32 : i32, i32, i32
  }
}

</mosaic_0001>

<llo_original>
// kernel: tpu_custom_call.1
$region0: #{tpu_custom_call.1}
  #allocation0 [shape = 'u32[]', space=smem, size = 0x4, offset = 0x4, fixed_abs, tag = 'smem constant byte address 0x4 - core index']
  #allocation1 [shape = 'u32[144,128]{1,0:T(1,128)}', space=vmem, size = 0x12000, scoped, tag = 'internal scratch']
  %s0 = inlined_call_operand.vmem [shape: f32[2,64,3], index: 0, kind: input, shape index: {}]
  %s1 = inlined_call_operand.vmem [shape: f32[3,24], index: 1, kind: input, shape index: {}]
  %s2 = inlined_call_operand.vmem [shape: bf16[52,128], index: 2, kind: input, shape index: {}]
  %s3 = inlined_call_operand.vmem [shape: f32[1,128], index: 3, kind: input, shape index: {}]
  %s4 = inlined_call_operand.vmem [shape: f32[1,128], index: 4, kind: input, shape index: {}]
  %s5 = inlined_call_operand.hbm [shape: bf16[2,64,128], index: 5, kind: output, shape index: {}]
  %s6 = sld [smem:[#allocation0]]
  $region53: #{tpu_custom_call.1} parent=0
    _
  %s8 = ssub.s32 1, %s6
  %s9 = scalar_select 0, %s8, %s6
  $region1: #{tpu_custom_call.1} parent=0
    #allocation2 [shape = 'u8[8192]{0}', space=vmem, size = 0x2000, scoped, tag = 'output window, operand 0']
    #allocation3 [shape = 's32[2]{0}', space=sflag, size = 0x8, scoped, tag = 'scoped memory for tpu_custom_call.1']
    %10 = vsyncpa [#allocation3], 0
    %s11 = scalar_lea.sflag [#allocation3], 1
    %12 = vsyncpa %s11, 0
    loop: start=0, step=1, limit=10
    $region2: #{tpu_custom_call.1} parent=1 // loop_pre_header
      _
    $region3: #{tpu_custom_call.1} parent=1 // loop_header
      %s14 = sphi 0, %s18
      %p15 = scmp.ge.s32.totalorder %s14, 10
      %s21 = sphi 0, %s33
      %s22 = sphi 0, %s29
      %s23 = sphi 0, %s21
      %s24 = sphi 0, %s22
      %s25 = sphi 0, %s23
      %s26 = sphi 0, %s24
      %s38 = sphi 0, %s40
      %s41 = sphi 0, %s38
      %s42 = sphi 0, %s41
      %s58 = sphi 0, %s42
      %s62 = sphi 0, %s62
      %s64 = sphi 0, %s62
      %s65 = sphi 0, %s64
      %s79 = sphi 0, %s65
      %s83 = sphi 0, %s83
      %s85 = sphi 0, %s83
      %s86 = sphi 0, %s85
      %s100 = sphi 0, %s86
      %s104 = sphi 0, %s104
      %s106 = sphi 0, %s104
      %s107 = sphi 0, %s106
      %s121 = sphi 0, %s107
      %s125 = sphi 0, %s125
      %s127 = sphi 0, %s125
      %s128 = sphi 0, %s127
      %s142 = sphi 0, %s128
      %s150 = sphi 0, %s152
      %s153 = sphi 0, %s150
      %s154 = sphi 0, %s153
      %s170 = sphi 0, %s154
    $region4: #{tpu_custom_call.1} parent=1 // loop_header_branch
      %17 = sbr.rel (%p15) target = $region8
    $region5: #{tpu_custom_call.1} parent=1 // loop_body
      %s19 = ssub.s32 %s14, 1
      %s20 = ssub.s32 %s14, 2
      %s27 = sadd.s32 1, %s22
      %p28 = scmp.ge.s32.totalorder %s27, 4
      %s29 = scalar_select %p28, 0, %s27
      %s30 = sadd.s32 1, %s21
      %s31 = scalar_select %p28, %s30, %s21
      %p32 = scmp.ge.s32.totalorder %s31, 2
      %s33 = scalar_select %p32, 0, %s31
      %s34 = ssub.s32 %s21, %s33
      %s35 = ssub.s32 %s22, %s29
      %s36 = sor.u32 %s34, %s35
      %p37 = scmp.eq.s32.totalorder %s36, 0
      %s39 = sadd.s32 %s38, 1
      %s40 = scalar_select %p37, %s38, %s39
      %p43 = pneg %p37
      %p44 = scmp.eq.s32.totalorder %s14, 7
      %p45 = por %p43, %p44
      %p46 = scmp.ne.s32.totalorder %s38, %s41
      %p47 = scmp.eq.s32.totalorder %s14, 0
      %p48 = por %p46, %p47
      %p49 = scmp.ne.s32.totalorder %s38, %s41
      %p50 = scmp.eq.s32.totalorder %s19, 7
      %p51 = por %p49, %p50
      %p52 = scmp.ne.s32.totalorder %s41, %s42
      %p53 = scmp.eq.s32.totalorder %s19, 0
      %p54 = por %p52, %p53
      %p55 = scmp.ne.s32.totalorder %s41, %s42
      %p56 = scmp.eq.s32.totalorder %s20, 7
      %p57 = por %p55, %p56
      %p59 = scmp.ne.s32.totalorder %s42, %s58
      %p60 = scmp.eq.s32.totalorder %s20, 0
      %p61 = por %p59, %p60
      %s63 = sadd.s32 %s62, 1
      %p66 = scmp.eq.s32.totalorder %s14, 7
      %p67 = scmp.ne.s32.totalorder %s62, %s64
      %p68 = scmp.eq.s32.totalorder %s14, 0
      %p69 = por %p67, %p68
      %p70 = scmp.ne.s32.totalorder %s62, %s64
      %p71 = scmp.eq.s32.totalorder %s19, 7
      %p72 = por %p70, %p71
      %p73 = scmp.ne.s32.totalorder %s64, %s65
      %p74 = scmp.eq.s32.totalorder %s19, 0
      %p75 = por %p73, %p74
      %p76 = scmp.ne.s32.totalorder %s64, %s65
      %p77 = scmp.eq.s32.totalorder %s20, 7
      %p78 = por %p76, %p77
      %p80 = scmp.ne.s32.totalorder %s65, %s79
      %p81 = scmp.eq.s32.totalorder %s20, 0
      %p82 = por %p80, %p81
      %s84 = sadd.s32 %s83, 1
      %p87 = scmp.eq.s32.totalorder %s14, 7
      %p88 = scmp.ne.s32.totalorder %s83, %s85
      %p89 = scmp.eq.s32.totalorder %s14, 0
      %p90 = por %p88, %p89
      %p91 = scmp.ne.s32.totalorder %s83, %s85
      %p92 = scmp.eq.s32.totalorder %s19, 7
      %p93 = por %p91, %p92
      %p94 = scmp.ne.s32.totalorder %s85, %s86
      %p95 = scmp.eq.s32.totalorder %s19, 0
      %p96 = por %p94, %p95
      %p97 = scmp.ne.s32.totalorder %s85, %s86
      %p98 = scmp.eq.s32.totalorder %s20, 7
      %p99 = por %p97, %p98
      %p101 = scmp.ne.s32.totalorder %s86, %s100
      %p102 = scmp.eq.s32.totalorder %s20, 0
      %p103 = por %p101, %p102
      %s105 = sadd.s32 %s104, 1
      %p108 = scmp.eq.s32.totalorder %s14, 7
      %p109 = scmp.ne.s32.totalorder %s104, %s106
      %p110 = scmp.eq.s32.totalorder %s14, 0
      %p111 = por %p109, %p110
      %p112 = scmp.ne.s32.totalorder %s104, %s106
      %p113 = scmp.eq.s32.totalorder %s19, 7
      %p114 = por %p112, %p113
      %p115 = scmp.ne.s32.totalorder %s106, %s107
      %p116 = scmp.eq.s32.totalorder %s19, 0
      %p117 = por %p115, %p116
      %p118 = scmp.ne.s32.totalorder %s106, %s107
      %p119 = scmp.eq.s32.totalorder %s20, 7
      %p120 = por %p118, %p119
      %p122 = scmp.ne.s32.totalorder %s107, %s121
      %p123 = scmp.eq.s32.totalorder %s20, 0
      %p124 = por %p122, %p123
      %s126 = sadd.s32 %s125, 1
      %p129 = scmp.eq.s32.totalorder %s14, 7
      %p130 = scmp.ne.s32.totalorder %s125, %s127
      %p131 = scmp.eq.s32.totalorder %s14, 0
      %p132 = por %p130, %p131
      %p133 = scmp.ne.s32.totalorder %s125, %s127
      %p134 = scmp.eq.s32.totalorder %s19, 7
      %p135 = por %p133, %p134
      %p136 = scmp.ne.s32.totalorder %s127, %s128
      %p137 = scmp.eq.s32.totalorder %s19, 0
      %p138 = por %p136, %p137
      %p139 = scmp.ne.s32.totalorder %s127, %s128
      %p140 = scmp.eq.s32.totalorder %s20, 7
      %p141 = por %p139, %p140
      %p143 = scmp.ne.s32.totalorder %s128, %s142
      %p144 = scmp.eq.s32.totalorder %s20, 0
      %p145 = por %p143, %p144
      %s146 = ssub.s32 %s21, %s33
      %s147 = ssub.s32 %s22, %s29
      %s148 = sor.u32 %s146, %s147
      %p149 = scmp.eq.s32.totalorder %s148, 0
      %s151 = sadd.s32 %s150, 1
      %s152 = scalar_select %p149, %s150, %s151
      %p155 = pneg %p149
      %p156 = scmp.eq.s32.totalorder %s14, 7
      %p157 = por %p155, %p156
      %p158 = scmp.ne.s32.totalorder %s150, %s153
      %p159 = scmp.eq.s32.totalorder %s14, 0
      %p160 = por %p158, %p159
      %p161 = scmp.ne.s32.totalorder %s150, %s153
      %p162 = scmp.eq.s32.totalorder %s19, 7
      %p163 = por %p161, %p162
      %p164 = scmp.ne.s32.totalorder %s153, %s154
      %p165 = scmp.eq.s32.totalorder %s19, 0
      %p166 = por %p164, %p165
      %p167 = scmp.ne.s32.totalorder %s153, %s154
      %p168 = scmp.eq.s32.totalorder %s20, 7
      %p169 = por %p167, %p168
      %p171 = scmp.ne.s32.totalorder %s154, %s170
      %p172 = scmp.eq.s32.totalorder %s20, 0
      %p173 = por %p171, %p172
      %p174 = scmp.le.s32.totalorder 1, %s14
      %p175 = scmp.lt.s32.totalorder %s14, 9
      %p176 = pnand %p174, %p175
      %p177 = pneg %p176
      // Predicated region
      $region9: #{tpu_custom_call.1} parent=5 // pred_check
        _
      $region10: #{tpu_custom_call.1} parent=5 // pred_check_branch
        %179 = sbr.rel (%p176) target = $region12
      $region11: #{tpu_custom_call.1} parent=5 // pred_region
        %s180 = ssub.s32 %s14, 1
        // Predicated region
        $region13: #{tpu_custom_call.1} parent=11 // pred_check
          %p181 = pneg %p75
        $region14: #{tpu_custom_call.1} parent=11 // pred_check_branch
          %183 = sbr.rel (%p181) target = $region16
        $region15: #{tpu_custom_call.1} parent=11 // pred_region
          _
        $region16: #{tpu_custom_call.1} parent=11 // pred_fallthru
          _
        // Predicated region
        $region17: #{tpu_custom_call.1} parent=11 // pred_check
          %p184 = pneg %p96
        $region18: #{tpu_custom_call.1} parent=11 // pred_check_branch
          %186 = sbr.rel (%p184) target = $region20
        $region19: #{tpu_custom_call.1} parent=11 // pred_region
          _
        $region20: #{tpu_custom_call.1} parent=11 // pred_fallthru
          _
        // Predicated region
        $region21: #{tpu_custom_call.1} parent=11 // pred_check
          %p187 = pneg %p117
        $region22: #{tpu_custom_call.1} parent=11 // pred_check_branch
          %189 = sbr.rel (%p187) target = $region24
        $region23: #{tpu_custom_call.1} parent=11 // pred_region
          _
        $region24: #{tpu_custom_call.1} parent=11 // pred_fallthru
          _
        // Predicated region
        $region25: #{tpu_custom_call.1} parent=11 // pred_check
          %p190 = pneg %p138
        $region26: #{tpu_custom_call.1} parent=11 // pred_check_branch
          %192 = sbr.rel (%p190) target = $region28
        $region27: #{tpu_custom_call.1} parent=11 // pred_region
          _
        $region28: #{tpu_custom_call.1} parent=11 // pred_fallthru
          _
      $region12: #{tpu_custom_call.1} parent=5 // pred_fallthru
        _
      %p193 = scmp.lt.s32.totalorder %s14, 8
      // Predicated region
      $region29: #{tpu_custom_call.1} parent=5 // pred_check
        %p194 = pneg %p193
      $region30: #{tpu_custom_call.1} parent=5 // pred_check_branch
        %196 = sbr.rel (%p194) target = $region32
      $region31: #{tpu_custom_call.1} parent=5 // pred_region
        // Predicated region
        $region33: #{tpu_custom_call.1} parent=31 // pred_check
          %p197 = pneg %p48
        $region34: #{tpu_custom_call.1} parent=31 // pred_check_branch
          %199 = sbr.rel (%p197) target = $region36
        $region35: #{tpu_custom_call.1} parent=31 // pred_region
          %s200 = smul.u32 2, %s22
          %p201 = scmp.lt.s32.totalorder %s21, 1
          %s202 = scalar_select %p201, %s21, 1
          %p203 = scmp.lt.s32.totalorder %s200, 7
          %s204 = scalar_select %p203, %s200, 7
          %s205 = smul.addr %s202, 8
          %s206 = sadd.s32 %s204, %s205
          %s207 = smul.addr %s206, 8
          %s208 = scalar_lea.vmem %s0, %s207
          %s209 = smul.u32 2, %s22
        $region36: #{tpu_custom_call.1} parent=31 // pred_fallthru
          _
      $region32: #{tpu_custom_call.1} parent=5 // pred_fallthru
        _
      %p210 = scmp.le.s32.totalorder 1, %s14
      %p211 = scmp.lt.s32.totalorder %s14, 9
      %p212 = pnand %p210, %p211
      %p213 = pneg %p212
      // Predicated region
      $region37: #{tpu_custom_call.1} parent=5 // pred_check
        _
      $region38: #{tpu_custom_call.1} parent=5 // pred_check_branch
        %215 = sbr.rel (%p212) target = $region40
      $region39: #{tpu_custom_call.1} parent=5 // pred_region
        %s216 = ssub.s32 %s14, 1
        %s217 = smul.u32 2, %s24
        %p218 = scmp.lt.s32.totalorder %s23, 1
        %s219 = scalar_select %p218, %s23, 1
        %p220 = scmp.lt.s32.totalorder %s217, 7
        %s221 = scalar_select %p220, %s217, 7
        %s222 = smul.addr %s219, 8
        %s223 = sadd.s32 %s221, %s222
        %s224 = smul.addr %s223, 8
        %s225 = scalar_lea.vmem %s0, %s224
        %p226 = pneg %p54
        %p227 = pneg %p51
        %p228 = pneg %p75
        %p229 = pneg %p72
        %p230 = pneg %p96
        %p231 = pneg %p93
        %p232 = pneg %p117
        %p233 = pneg %p114
        %p234 = pneg %p138
        %p235 = pneg %p135
        %p236 = pneg %p166
        %p237 = pneg %p163
        %s238 = sand.u32 %s153, 1
        %s239 = scalar_lea.sflag [#allocation3], %s238
        %s240 = sand.u32 %s153, 1
        %s241 = smul.addr %s240, 8
        %s242 = scalar_lea.vmem [#allocation2], %s241
        %s243 = smul.u32 2, %s24
        %p244 = scmp.lt.s32.totalorder %s23, 1
        %s245 = scalar_select %p244, %s23, 1
        %p246 = scmp.lt.s32.totalorder %s243, 7
        %s247 = scalar_select %p246, %s243, 7
        %s248 = smul.addr %s245, 8
        %s249 = sadd.s32 %s247, %s248
        %s250 = smul.addr %s249, 8
        %s251 = scalar_lea.vmem %s0, %s250
        %s252 = smul.u32 2, %s24
        %s253 = smul.u32 2, %s24
        %v255 = vld [vmem:[%s251] sm:$0xff]
        %v256 = vld [vmem:[%s251 + $0x8] sm:$0xff]
        %v257 = vld [vmem:[%s1] sm:$0x7]
        %259 = vset.pattern.permute.xlu0 0
        %260 = vperm.xlu0 %259, %v255
        %v261 = vpop.permute.xlu0 %260
        %264 = vset.pattern.permute.xlu0 0
        %265 = vperm.xlu0 %264, %v256
        %v266 = vpop.permute.xlu0 %265
        %v268 = vlaneseq
        %v269 = vshrl.u32 %v268, 7
        %v270 = vsub.s32 0, %v269
        %v271 = vrot.slane %v257, %v270
        %v272 = vmul.f32 %v261, %v271
        %v273 = vmul.f32 %v266, %v271
        %274 = vset.pattern.permute.xlu0 1
        %275 = vperm.xlu0 %274, %v255
        %v276 = vpop.permute.xlu0 %275
        %278 = vset.pattern.permute.xlu0 1
        %279 = vperm.xlu0 %278, %v256
        %v280 = vpop.permute.xlu0 %279
        %v282 = vlaneseq
        %v283 = vshrl.u32 %v282, 7
        %v284 = vsub.s32 1, %v283
        %v285 = vrot.slane %v257, %v284
        %v286 = vmul.f32 %v276, %v285
        %v287 = vmul.f32 %v280, %v285
        %v288 = vadd.f32 %v272, %v286
        %v289 = vadd.f32 %v273, %v287
        %290 = vset.pattern.permute.xlu0 2
        %291 = vperm.xlu0 %290, %v255
        %v292 = vpop.permute.xlu0 %291
        %294 = vset.pattern.permute.xlu0 2
        %295 = vperm.xlu0 %294, %v256
        %v296 = vpop.permute.xlu0 %295
        %v298 = vlaneseq
        %v299 = vshrl.u32 %v298, 7
        %v300 = vsub.s32 2, %v299
        %v301 = vrot.slane %v257, %v300
        %v302 = vmul.f32 %v292, %v301
        %v303 = vmul.f32 %v296, %v301
        %v304 = vadd.f32 %v288, %v302
        %v305 = vadd.f32 %v289, %v303
        %v306 = vand.u32 2147483647, %v304
        %vm307 = vcmp.le.f32.partialorder %v306, 0.7853982
        %vm308 = vcmp.lt.s32.totalorder %v304, 0
        %v309 = vand.u32 %v304, 2139095040
        %v310 = vshrl.u32 %v309, 23
        %v311 = vsub.s32 %v310, 127
        %v312 = vand.u32 2147483647, %v304
        %v313 = vand.u32 %v312, 8388607
        %v314 = vor.u32 %v313, 8388608
        %v315 = vsub.s32 0, %v314
        %v316 = vadd.s32 %v311, 1
        %vm317 = vcmp.gt.s32.totalorder %v316, 0
        %v318 = vsel %vm317, %v316, 0
        %v319 = vshrl.u32 %v318, 5
        %v320 = vand.u32 %v318, 31
        %v321 = vsub.s32 32, %v320
        %v322 = vshrl.u32 683565275, %v321
        %v323 = vshll.u32 683565275, %v320
        %v324 = vshrl.u32 2475754826, %v321
        %v325 = vor.u32 %v323, %v324
        %v326 = vshll.u32 2475754826, %v320
        %v327 = vshrl.u32 2131351028, %v321
        %v328 = vor.u32 %v326, %v327
        %v329 = vshll.u32 2131351028, %v320
        %v330 = vshrl.u32 2102212464, %v321
        %v331 = vor.u32 %v329, %v330
        %v332 = vshll.u32 2102212464, %v320
        %v333 = vshrl.u32 920167782, %v321
        %v334 = vor.u32 %v332, %v333
        %v335 = vshll.u32 920167782, %v320
        %v336 = vshrl.u32 1326507024, %v321
        %v337 = vor.u32 %v335, %v336
        %vm338 = vcmp.lt.s32.totalorder %v319, 1
        %vm339 = vcmp.lt.s32.totalorder %v319, 2
        %vm340 = vcmp.lt.s32.totalorder %v319, 3
        %vm341 = vcmp.lt.s32.totalorder %v319, 4
        %v342 = vsel %vm338, %v322, %v325
        %v343 = vsel %vm341, %v331, 2102212464
        %v344 = vsel %vm340, %v328, %v343
        %v345 = vsel %vm339, %v342, %v344
        %v346 = vsel %vm338, %v325, %v328
        %v347 = vsel %vm341, %v334, 920167782
        %v348 = vsel %vm340, %v331, %v347
        %v349 = vsel %vm339, %v346, %v348
        %v350 = vsel %vm338, %v328, %v331
        %v351 = vsel %vm341, %v337, 1326507024
        %v352 = vsel %vm340, %v334, %v351
        %v353 = vsel %vm339, %v350, %v352
        %v354 = vshll.u32 %v314, 8
        %v355 = vmul.u32.u64.compose %v354, %v353
        %v356 = vextract.low.u32 %v355
        %v357 = vextract.high.u32 %v355
        %v358 = vmul.u32.u64.compose %v354, %v349
        %v359 = vextract.low.u32 %v358
        %v360 = vextract.high.u32 %v358
        %v361 = vmul.u32 %v354, %v345
        %v362 = vadd.s32 %v357, %v359
        %vm363 = vc.u32 %v357, %v359
        %v364 = vadd.s32 %v360, 1
        %v365 = vsel %vm363, %v364, %v360
        %v366 = vadd.s32 %v361, %v365
        %v367 = vadd.s32 %v366, 536870912
        %v368 = vshrl.u32 %v367, 30
        %v369 = vshll.u32 %v368, 30
        %v370 = vsub.s32 %v366, %v369
        %vm371 = vcmp.lt.s32.totalorder %v370, 0
        %v372 = vsub.s32 0, %v370
        %v373 = vsel %vm371, %v372, %v370
        %v374 = vclz %v373
        %v375 = vsub.s32 %v374, 2
        %vm376 = vcmp.gt.s32.totalorder 0, %v375
        %v377 = vsel %vm376, 0, %v375
        %v378 = vsub.s32 32, %v377
        %v379 = vshll.u32 %v370, %v377
        %v380 = vshrl.u32 %v362, %v378
        %v381 = vor.u32 %v379, %v380
        %v382 = vsub.s32 4294967266, %v377
        %v383 = vadd.s32 %v382, 127
        %v384 = vshll.u32 %v383, 23
        %v385 = vor.u32 4788187, %v384
        %v386 = vand.u32 2147483647, %v385
        %v388 = vcvt.s32.f32 %v381
        %v389 = vmul.f32 %v388, %v386
        %v390 = vxor.u32 %v389, 2147483648
        %v391 = vsel %vm308, %v390, %v389
        %v392 = vsub.s32 4, %v368
        %v393 = vsel %vm308, %v392, %v368
        %v394 = vsel %vm307, %v304, %v391
        %v395 = vsel %vm307, 0, %v393
        %v396 = vcosq.f32.pop %v394
        %v397 = vsinq.f32.pop %v394
        %vm398 = vweird.f32 %v304
        %v399 = vadd.s32 %v395, 3
        %v400 = vand.u32 %v399, 3
        %vm401 = vcmp.lt.s32.totalorder %v400, 2
        %vm402 = vcmp.eq.s32.totalorder %v400, 0
        %v403 = vxor.u32 %v397, 2147483648
        %v404 = vsel %vm402, %v396, %v403
        %vm405 = vcmp.eq.s32.totalorder %v400, 2
        %v406 = vxor.u32 %v396, 2147483648
        %v407 = vsel %vm405, %v406, %v397
        %v408 = vsel %vm401, %v404, %v407
        %v409 = vsel %vm398, nan, %v408
        %v410 = vand.u32 2147483647, %v305
        %vm411 = vcmp.le.f32.partialorder %v410, 0.7853982
        %vm412 = vcmp.lt.s32.totalorder %v305, 0
        %v413 = vand.u32 %v305, 2139095040
        %v414 = vshrl.u32 %v413, 23
        %v415 = vsub.s32 %v414, 127
        %v416 = vand.u32 2147483647, %v305
        %v417 = vand.u32 %v416, 8388607
        %v418 = vor.u32 %v417, 8388608
        %v419 = vsub.s32 0, %v418
        %v420 = vadd.s32 %v415, 1
        %vm421 = vcmp.gt.s32.totalorder %v420, 0
        %v422 = vsel %vm421, %v420, 0
        %v423 = vshrl.u32 %v422, 5
        %v424 = vand.u32 %v422, 31
        %v425 = vsub.s32 32, %v424
        %v426 = vshrl.u32 683565275, %v425
        %v427 = vshll.u32 683565275, %v424
        %v428 = vshrl.u32 2475754826, %v425
        %v429 = vor.u32 %v427, %v428
        %v430 = vshll.u32 2475754826, %v424
        %v431 = vshrl.u32 2131351028, %v425
        %v432 = vor.u32 %v430, %v431
        %v433 = vshll.u32 2131351028, %v424
        %v434 = vshrl.u32 2102212464, %v425
        %v435 = vor.u32 %v433, %v434
        %v436 = vshll.u32 2102212464, %v424
        %v437 = vshrl.u32 920167782, %v425
        %v438 = vor.u32 %v436, %v437
        %v439 = vshll.u32 920167782, %v424
        %v440 = vshrl.u32 1326507024, %v425
        %v441 = vor.u32 %v439, %v440
        %vm442 = vcmp.lt.s32.totalorder %v423, 1
        %vm443 = vcmp.lt.s32.totalorder %v423, 2
        %vm444 = vcmp.lt.s32.totalorder %v423, 3
        %vm445 = vcmp.lt.s32.totalorder %v423, 4
        %v446 = vsel %vm442, %v426, %v429
        %v447 = vsel %vm445, %v435, 2102212464
        %v448 = vsel %vm444, %v432, %v447
        %v449 = vsel %vm443, %v446, %v448
        %v450 = vsel %vm442, %v429, %v432
        %v451 = vsel %vm445, %v438, 920167782
        %v452 = vsel %vm444, %v435, %v451
        %v453 = vsel %vm443, %v450, %v452
        %v454 = vsel %vm442, %v432, %v435
        %v455 = vsel %vm445, %v441, 1326507024
        %v456 = vsel %vm444, %v438, %v455
        %v457 = vsel %vm443, %v454, %v456
        %v458 = vshll.u32 %v418, 8
        %v459 = vmul.u32.u64.compose %v458, %v457
        %v460 = vextract.low.u32 %v459
        %v461 = vextract.high.u32 %v459
        %v462 = vmul.u32.u64.compose %v458, %v453
        %v463 = vextract.low.u32 %v462
        %v464 = vextract.high.u32 %v462
        %v465 = vmul.u32 %v458, %v449
        %v466 = vadd.s32 %v461, %v463
        %vm467 = vc.u32 %v461, %v463
        %v468 = vadd.s32 %v464, 1
        %v469 = vsel %vm467, %v468, %v464
        %v470 = vadd.s32 %v465, %v469
        %v471 = vadd.s32 %v470, 536870912
        %v472 = vshrl.u32 %v471, 30
        %v473 = vshll.u32 %v472, 30
        %v474 = vsub.s32 %v470, %v473
        %vm475 = vcmp.lt.s32.totalorder %v474, 0
        %v476 = vsub.s32 0, %v474
        %v477 = vsel %vm475, %v476, %v474
        %v478 = vclz %v477
        %v479 = vsub.s32 %v478, 2
        %vm480 = vcmp.gt.s32.totalorder 0, %v479
        %v481 = vsel %vm480, 0, %v479
        %v482 = vsub.s32 32, %v481
        %v483 = vshll.u32 %v474, %v481
        %v484 = vshrl.u32 %v466, %v482
        %v485 = vor.u32 %v483, %v484
        %v486 = vsub.s32 4294967266, %v481
        %v487 = vadd.s32 %v486, 127
        %v488 = vshll.u32 %v487, 23
        %v489 = vor.u32 4788187, %v488
        %v490 = vand.u32 2147483647, %v489
        %v492 = vcvt.s32.f32 %v485
        %v493 = vmul.f32 %v492, %v490
        %v494 = vxor.u32 %v493, 2147483648
        %v495 = vsel %vm412, %v494, %v493
        %v496 = vsub.s32 4, %v472
        %v497 = vsel %vm412, %v496, %v472
        %v498 = vsel %vm411, %v305, %v495
        %v499 = vsel %vm411, 0, %v497
        %v500 = vcosq.f32.pop %v498
        %v501 = vsinq.f32.pop %v498
        %vm502 = vweird.f32 %v305
        %v503 = vadd.s32 %v499, 3
        %v504 = vand.u32 %v503, 3
        %vm505 = vcmp.lt.s32.totalorder %v504, 2
        %vm506 = vcmp.eq.s32.totalorder %v504, 0
        %v507 = vxor.u32 %v501, 2147483648
        %v508 = vsel %vm506, %v500, %v507
        %vm509 = vcmp.eq.s32.totalorder %v504, 2
        %v510 = vxor.u32 %v500, 2147483648
        %v511 = vsel %vm509, %v510, %v501
        %v512 = vsel %vm505, %v508, %v511
        %v513 = vsel %vm502, nan, %v512
        %v514 = vand.u32 2147483647, %v304
        %vm515 = vcmp.le.f32.partialorder %v514, 0.7853982
        %vm516 = vcmp.lt.s32.totalorder %v304, 0
        %v517 = vand.u32 %v304, 2139095040
        %v518 = vshrl.u32 %v517, 23
        %v519 = vsub.s32 %v518, 127
        %v520 = vand.u32 2147483647, %v304
        %v521 = vand.u32 %v520, 8388607
        %v522 = vor.u32 %v521, 8388608
        %v523 = vsub.s32 0, %v522
        %v524 = vadd.s32 %v519, 1
        %vm525 = vcmp.gt.s32.totalorder %v524, 0
        %v526 = vsel %vm525, %v524, 0
        %v527 = vshrl.u32 %v526, 5
        %v528 = vand.u32 %v526, 31
        %v529 = vsub.s32 32, %v528
        %v530 = vshrl.u32 683565275, %v529
        %v531 = vshll.u32 683565275, %v528
        %v532 = vshrl.u32 2475754826, %v529
        %v533 = vor.u32 %v531, %v532
        %v534 = vshll.u32 2475754826, %v528
        %v535 = vshrl.u32 2131351028, %v529
        %v536 = vor.u32 %v534, %v535
        %v537 = vshll.u32 2131351028, %v528
        %v538 = vshrl.u32 2102212464, %v529
        %v539 = vor.u32 %v537, %v538
        %v540 = vshll.u32 2102212464, %v528
        %v541 = vshrl.u32 920167782, %v529
        %v542 = vor.u32 %v540, %v541
        %v543 = vshll.u32 920167782, %v528
        %v544 = vshrl.u32 1326507024, %v529
        %v545 = vor.u32 %v543, %v544
        %vm546 = vcmp.lt.s32.totalorder %v527, 1
        %vm547 = vcmp.lt.s32.totalorder %v527, 2
        %vm548 = vcmp.lt.s32.totalorder %v527, 3
        %vm549 = vcmp.lt.s32.totalorder %v527, 4
        %v550 = vsel %vm546, %v530, %v533
        %v551 = vsel %vm549, %v539, 2102212464
        %v552 = vsel %vm548, %v536, %v551
        %v553 = vsel %vm547, %v550, %v552
        %v554 = vsel %vm546, %v533, %v536
        %v555 = vsel %vm549, %v542, 920167782
        %v556 = vsel %vm548, %v539, %v555
        %v557 = vsel %vm547, %v554, %v556
        %v558 = vsel %vm546, %v536, %v539
        %v559 = vsel %vm549, %v545, 1326507024
        %v560 = vsel %vm548, %v542, %v559
        %v561 = vsel %vm547, %v558, %v560
        %v562 = vshll.u32 %v522, 8
        %v563 = vmul.u32.u64.compose %v562, %v561
        %v564 = vextract.low.u32 %v563
        %v565 = vextract.high.u32 %v563
        %v566 = vmul.u32.u64.compose %v562, %v557
        %v567 = vextract.low.u32 %v566
        %v568 = vextract.high.u32 %v566
        %v569 = vmul.u32 %v562, %v553
        %v570 = vadd.s32 %v565, %v567
        %vm571 = vc.u32 %v565, %v567
        %v572 = vadd.s32 %v568, 1
        %v573 = vsel %vm571, %v572, %v568
        %v574 = vadd.s32 %v569, %v573
        %v575 = vadd.s32 %v574, 536870912
        %v576 = vshrl.u32 %v575, 30
        %v577 = vshll.u32 %v576, 30
        %v578 = vsub.s32 %v574, %v577
        %vm579 = vcmp.lt.s32.totalorder %v578, 0
        %v580 = vsub.s32 0, %v578
        %v581 = vsel %vm579, %v580, %v578
        %v582 = vclz %v581
        %v583 = vsub.s32 %v582, 2
        %vm584 = vcmp.gt.s32.totalorder 0, %v583
        %v585 = vsel %vm584, 0, %v583
        %v586 = vsub.s32 32, %v585
        %v587 = vshll.u32 %v578, %v585
        %v588 = vshrl.u32 %v570, %v586
        %v589 = vor.u32 %v587, %v588
        %v590 = vsub.s32 4294967266, %v585
        %v591 = vadd.s32 %v590, 127
        %v592 = vshll.u32 %v591, 23
        %v593 = vor.u32 4788187, %v592
        %v594 = vand.u32 2147483647, %v593
        %v596 = vcvt.s32.f32 %v589
        %v597 = vmul.f32 %v596, %v594
        %v598 = vxor.u32 %v597, 2147483648
        %v599 = vsel %vm516, %v598, %v597
        %v600 = vsub.s32 4, %v576
        %v601 = vsel %vm516, %v600, %v576
        %v602 = vsel %vm515, %v304, %v599
        %v603 = vsel %vm515, 0, %v601
        %v604 = vcosq.f32.pop %v602
        %v605 = vsinq.f32.pop %v602
        %vm606 = vweird.f32 %v304
        %v607 = vand.u32 %v603, 3
        %vm608 = vcmp.lt.s32.totalorder %v607, 2
        %vm609 = vcmp.eq.s32.totalorder %v607, 0
        %v610 = vxor.u32 %v605, 2147483648
        %v611 = vsel %vm609, %v604, %v610
        %vm612 = vcmp.eq.s32.totalorder %v607, 2
        %v613 = vxor.u32 %v604, 2147483648
        %v614 = vsel %vm612, %v613, %v605
        %v615 = vsel %vm608, %v611, %v614
        %v616 = vsel %vm606, nan, %v615
        %v617 = vand.u32 2147483647, %v305
        %vm618 = vcmp.le.f32.partialorder %v617, 0.7853982
        %vm619 = vcmp.lt.s32.totalorder %v305, 0
        %v620 = vand.u32 %v305, 2139095040
        %v621 = vshrl.u32 %v620, 23
        %v622 = vsub.s32 %v621, 127
        %v623 = vand.u32 2147483647, %v305
        %v624 = vand.u32 %v623, 8388607
        %v625 = vor.u32 %v624, 8388608
        %v626 = vsub.s32 0, %v625
        %v627 = vadd.s32 %v622, 1
        %vm628 = vcmp.gt.s32.totalorder %v627, 0
        %v629 = vsel %vm628, %v627, 0
        %v630 = vshrl.u32 %v629, 5
        %v631 = vand.u32 %v629, 31
        %v632 = vsub.s32 32, %v631
        %v633 = vshrl.u32 683565275, %v632
        %v634 = vshll.u32 683565275, %v631
        %v635 = vshrl.u32 2475754826, %v632
        %v636 = vor.u32 %v634, %v635
        %v637 = vshll.u32 2475754826, %v631
        %v638 = vshrl.u32 2131351028, %v632
        %v639 = vor.u32 %v637, %v638
        %v640 = vshll.u32 2131351028, %v631
        %v641 = vshrl.u32 2102212464, %v632
        %v642 = vor.u32 %v640, %v641
        %v643 = vshll.u32 2102212464, %v631
        %v644 = vshrl.u32 920167782, %v632
        %v645 = vor.u32 %v643, %v644
        %v646 = vshll.u32 920167782, %v631
        %v647 = vshrl.u32 1326507024, %v632
        %v648 = vor.u32 %v646, %v647
        %vm649 = vcmp.lt.s32.totalorder %v630, 1
        %vm650 = vcmp.lt.s32.totalorder %v630, 2
        %vm651 = vcmp.lt.s32.totalorder %v630, 3
        %vm652 = vcmp.lt.s32.totalorder %v630, 4
        %v653 = vsel %vm649, %v633, %v636
        %v654 = vsel %vm652, %v642, 2102212464
        %v655 = vsel %vm651, %v639, %v654
        %v656 = vsel %vm650, %v653, %v655
        %v657 = vsel %vm649, %v636, %v639
        %v658 = vsel %vm652, %v645, 920167782
        %v659 = vsel %vm651, %v642, %v658
        %v660 = vsel %vm650, %v657, %v659
        %v661 = vsel %vm649, %v639, %v642
        %v662 = vsel %vm652, %v648, 1326507024
        %v663 = vsel %vm651, %v645, %v662
        %v664 = vsel %vm650, %v661, %v663
        %v665 = vshll.u32 %v625, 8
        %v666 = vmul.u32.u64.compose %v665, %v664
        %v667 = vextract.low.u32 %v666
        %v668 = vextract.high.u32 %v666
        %v669 = vmul.u32.u64.compose %v665, %v660
        %v670 = vextract.low.u32 %v669
        %v671 = vextract.high.u32 %v669
        %v672 = vmul.u32 %v665, %v656
        %v673 = vadd.s32 %v668, %v670
        %vm674 = vc.u32 %v668, %v670
        %v675 = vadd.s32 %v671, 1
        %v676 = vsel %vm674, %v675, %v671
        %v677 = vadd.s32 %v672, %v676
        %v678 = vadd.s32 %v677, 536870912
        %v679 = vshrl.u32 %v678, 30
        %v680 = vshll.u32 %v679, 30
        %v681 = vsub.s32 %v677, %v680
        %vm682 = vcmp.lt.s32.totalorder %v681, 0
        %v683 = vsub.s32 0, %v681
        %v684 = vsel %vm682, %v683, %v681
        %v685 = vclz %v684
        %v686 = vsub.s32 %v685, 2
        %vm687 = vcmp.gt.s32.totalorder 0, %v686
        %v688 = vsel %vm687, 0, %v686
        %v689 = vsub.s32 32, %v688
        %v690 = vshll.u32 %v681, %v688
        %v691 = vshrl.u32 %v673, %v689
        %v692 = vor.u32 %v690, %v691
        %v693 = vsub.s32 4294967266, %v688
        %v694 = vadd.s32 %v693, 127
        %v695 = vshll.u32 %v694, 23
        %v696 = vor.u32 4788187, %v695
        %v697 = vand.u32 2147483647, %v696
        %v699 = vcvt.s32.f32 %v692
        %v700 = vmul.f32 %v699, %v697
        %v701 = vxor.u32 %v700, 2147483648
        %v702 = vsel %vm619, %v701, %v700
        %v703 = vsub.s32 4, %v679
        %v704 = vsel %vm619, %v703, %v679
        %v705 = vsel %vm618, %v305, %v702
        %v706 = vsel %vm618, 0, %v704
        %v707 = vcosq.f32.pop %v705
        %v708 = vsinq.f32.pop %v705
        %vm709 = vweird.f32 %v305
        %v710 = vand.u32 %v706, 3
        %vm711 = vcmp.lt.s32.totalorder %v710, 2
        %vm712 = vcmp.eq.s32.totalorder %v710, 0
        %v713 = vxor.u32 %v708, 2147483648
        %v714 = vsel %vm712, %v707, %v713
        %vm715 = vcmp.eq.s32.totalorder %v710, 2
        %v716 = vxor.u32 %v707, 2147483648
        %v717 = vsel %vm715, %v716, %v708
        %v718 = vsel %vm711, %v714, %v717
        %v719 = vsel %vm709, nan, %v718
        %722 = vrot.lane.b32.xlu0 %v616, 24
        %v723 = vpop.permute.xlu0 %722
        %724 = vrot.lane.b32.xlu0 %v719, 24
        %v725 = vpop.permute.xlu0 %724
        %728 = vrot.lane.b32.xlu0 %v255, 48
        %v729 = vpop.permute.xlu0 %728
        %730 = vrot.lane.b32.xlu0 %v256, 48
        %v731 = vpop.permute.xlu0 %730
        %vm734 = vcmask 195584
        %v735 = vsel %vm734, %v409, %v723
        %v736 = vsel %vm734, %v513, %v725
        %vm737 = vcmask 392192
        %v738 = vsel %vm737, %v735, %v729
        %v739 = vsel %vm737, %v736, %v731
        %vm740 = vcmask 416768
        %v741 = vsel %vm740, %v738, 1.0
        %v742 = vsel %vm740, %v739, 1.0
        %v743 = vpack.c.bf16 %v742, %v741
        %v744 = vld [vmem:[%s2] sm:$0xf]
        %v745 = vld [vmem:[%s2 + $0x4] sm:$0xf]
        %v746 = vld [vmem:[%s2 + $0x8] sm:$0xf]
        %v747 = vld [vmem:[%s2 + $0xc] sm:$0xf]
        %v748 = vld [vmem:[%s2 + $0x10] sm:$0xf]
        %v749 = vld [vmem:[%s2 + $0x14] sm:$0xf]
        %v750 = vld [vmem:[%s2 + $0x18] sm:$0x3]
        %v758 = vunpack.c.l.b16 %v744
        %v759 = vunpack.c.l.b16 %v745
        %v760 = vunpack.c.l.b16 %v746
        %v761 = vunpack.c.l.b16 %v747
        %v762 = vunpack.c.l.b16 %v748
        %v763 = vunpack.c.l.b16 %v749
        %v764 = vunpack.c.l.b16 %v750
        %v765 = vpack.c.b16 %v759, %v758
        %v766 = vpack.c.b16 %v761, %v760
        %v767 = vpack.c.b16 %v763, %v762
        %v768 = vpack.c.b16 %v764, %v764
        %vm772 = vcmask 424960
        %v774 = vsel %vm772, %v743, 0
        %vm776 = vcmask 1041408
        %v778 = vsel %vm776, %v768, 0
        %780 = vmatprep.subr.bf16.mxu0 0
        %781 = vmatpush1.bf16.msra.mxu0 0
        %782 = vmatprep.subr.bf16.mxu0 0
        %783 = vmatpush1.bf16.msra.mxu0 0
        %784 = vmatprep.subr.bf16.mxu0 0
        %785 = vmatpush1.bf16.msra.mxu0 0
        %786 = vmatprep.subr.bf16.mxu0 0
        %787 = vmatpush1.bf16.msra.mxu0 0
        %788 = vmatprep.subr.bf16.mxu0 0
        %789 = vmatpush1.bf16.msra.mxu0 %v778
        %790 = vmatprep.subr.bf16.mxu0 0
        %791 = vmatpush1.bf16.msra.mxu0 %v767
        %792 = vmatprep.subr.bf16.mxu0 0
        %793 = vmatpush1.bf16.msra.mxu0 %v766
        %794 = vmatprep.subr.bf16.mxu0 0
        %795 = vmatpush1.bf16.msra.mxu0 %v765
        %796 = vmatprep.subr.bf16.mxu0 0
        %797 = vmatpush2.bf16.msra.mxu0 0
        %798 = vmatprep.subr.bf16.mxu0 0
        %799 = vmatpush2.bf16.msra.mxu0 0
        %800 = vmatprep.subr.bf16.mxu0 0
        %801 = vmatpush2.bf16.msra.mxu0 0
        %802 = vmatprep.subr.bf16.mxu0 0
        %803 = vmatpush2.bf16.msra.mxu0 0
        %804 = vmatprep.subr.bf16.mxu0 0
        %805 = vmatpush2.bf16.msra.mxu0 0
        %806 = vmatprep.subr.bf16.mxu0 0
        %807 = vmatpush2.bf16.msra.mxu0 0
        %808 = vmatprep.subr.bf16.mxu0 0
        %809 = vmatpush2.bf16.msra.mxu0 0
        %810 = vmatprep.subr.bf16.mxu0 0
        %811 = vmatpush2.bf16.msra.mxu0 0
        %812 = vmatprep.mubr.bf16.mxu0 0
        %813 = vmatmul.mubr.bf16.gmra.mxu0 %v774
        %v814 = vpop.f32.mrf.mxu0
        %v815 = vadd.f32 0.0, %v814
        %v816 = vpop.f32.mrf.mxu0
        %v817 = vpop.f32.mrf.mxu0
        %v818 = vadd.f32 0.0, %v817
        %v819 = vpop.f32.mrf.mxu0
        %820 = vdwg.mxu0
        %821 = vadd.xlane.f32.xlu0 %v815
        %v822 = vpop.xlane.xlu0 %821
        %823 = vadd.xlane.f32.xlu0 %v818
        %v824 = vpop.xlane.xlu0 %823
        %v825 = vmul.f32 %v815, %v815
        %v826 = vmul.f32 %v818, %v818
        %827 = vadd.xlane.f32.xlu0 %v825
        %v828 = vpop.xlane.xlu0 %827
        %829 = vadd.xlane.f32.xlu0 %v826
        %v830 = vpop.xlane.xlu0 %829
        %v831 = vmul.f32 %v822, 0.0078125
        %v832 = vmul.f32 %v824, 0.0078125
        %v833 = vmul.f32 %v828, 0.0078125
        %v834 = vmul.f32 %v830, 0.0078125
        %v835 = vmul.f32 %v831, %v831
        %v836 = vmul.f32 %v832, %v832
        %v837 = vsub.f32 %v833, %v835
        %v838 = vsub.f32 %v834, %v836
        %v839 = vadd.f32 %v837, 1e-05
        %v840 = vadd.f32 %v838, 1e-05
        %v841 = vrsqrt.pop %v839
        %v842 = vrsqrt.pop %v840
        %v843 = vsub.f32 %v815, %v831
        %v844 = vsub.f32 %v818, %v832
        %v845 = vld [vmem:[%s3] sm:$0x1]
        %v847 = vlaneseq
        %v848 = vshrl.u32 %v847, 7
        %v849 = vsub.s32 0, %v848
        %v850 = vrot.slane %v845, %v849
        %v852 = vmul.f32 %v841, %v850
        %v853 = vmul.f32 %v842, %v850
        %v854 = vmul.f32 %v843, %v852
        %v855 = vmul.f32 %v844, %v853
        %v856 = vld [vmem:[%s4] sm:$0x1]
        %v858 = vlaneseq
        %v859 = vshrl.u32 %v858, 7
        %v860 = vsub.s32 0, %v859
        %v861 = vrot.slane %v856, %v860
        %v863 = vadd.f32 %v854, %v861
        %v864 = vadd.f32 %v855, %v861
        %v865 = vpack.c.bf16 %v864, %v863
        %v867 = vunpack.c.l.b16 %v865
        %v868 = vunpack.c.h.b16 %v865
        %v869 = vpack.c.b16 %v867, %v867
        %v870 = vpack.c.b16 %v868, %v868
        %873 = vst [vmem:[%s242] sm:$0xf] %v869
        %874 = vst [vmem:[%s242 + $0x4] sm:$0xf] %v870
        %s875 = sand.u32 %s153, 1
        %s876 = scalar_lea.sflag [#allocation3], %s875
        %s877 = sand.u32 %s153, 1
        %s878 = smul.addr %s877, 8
        %s879 = scalar_lea.vmem [#allocation2], %s878
        // Predicated region
        $region41: #{tpu_custom_call.1} parent=39 // pred_check
          %p880 = pneg %p163
        $region42: #{tpu_custom_call.1} parent=39 // pred_check_branch
          %882 = sbr.rel (%p880) target = $region44
        $region43: #{tpu_custom_call.1} parent=39 // pred_region
          %s883 = smul.u32 2, %s24
          %s885 = ssub.s32 128, 128
          %886 = vsyncadd %s876, %s885
          %s887 = smul.addr %s23, 8
          %s888 = sadd.s32 %s883, %s887
          %s889 = smul.addr %s888, 64
          %s890 = scalar_lea.hbm %s5, %s889
          %s891 = sshll.u32 %s879, 4
          %s892 = int_to_ptr.vmem [resolvable:$true] %s891
          %897 = dma.vmem_to_hbm [thread:$0]  %s892, 128, %s890, %s876, 64, 64, 4
        $region44: #{tpu_custom_call.1} parent=39 // pred_fallthru
          _
      $region40: #{tpu_custom_call.1} parent=5 // pred_fallthru
        _
      %p898 = scmp.le.s32.totalorder 2, %s14
      // Predicated region
      $region45: #{tpu_custom_call.1} parent=5 // pred_check
        %p899 = pneg %p898
      $region46: #{tpu_custom_call.1} parent=5 // pred_check_branch
        %901 = sbr.rel (%p899) target = $region48
      $region47: #{tpu_custom_call.1} parent=5 // pred_region
        %s902 = ssub.s32 %s14, 2
        // Predicated region
        $region49: #{tpu_custom_call.1} parent=47 // pred_check
          %p903 = pneg %p169
        $region50: #{tpu_custom_call.1} parent=47 // pred_check_branch
          %905 = sbr.rel (%p903) target = $region52
        $region51: #{tpu_custom_call.1} parent=47 // pred_region
          %s906 = sand.u32 %s154, 1
          %s907 = scalar_lea.sflag [#allocation3], %s906
          %s908 = sand.u32 %s154, 1
          %s909 = smul.addr %s908, 8
          %s910 = scalar_lea.vmem [#allocation2], %s909
          %911 = dma.done %s907, 128
        $region52: #{tpu_custom_call.1} parent=47 // pred_fallthru
          _
      $region48: #{tpu_custom_call.1} parent=5 // pred_fallthru
        _
    $region6: #{tpu_custom_call.1} parent=1 // loop_footer
      %s18 = sadd.s32 1, %s14
    $region7: #{tpu_custom_call.1} parent=1 // loop_footer_branch
      %13 = sbr.rel target = $region3
    $region8: #{tpu_custom_call.1} parent=1 // loop_exit
      _
    %912 = vsyncpa [#allocation3], 1
    %s913 = scalar_lea.sflag [#allocation3], 1
    %914 = vsyncpa %s913, 1

</llo_original>
